<compile_context>
chip_gen: v7x
topology: tpu7x:2x2x1
jax: 0.10.0
libtpu: 0.0.40
codegen_flags: <defaults>
</compile_context>

<pallas_src>
import functools
import math

import jax
import jax.numpy as jnp
from jax.experimental import pallas as pl
from jax.experimental.pallas import tpu as pltpu


# ----------------------------------------------------------------------------
# Kernel
# ----------------------------------------------------------------------------
def _qfilter_kernel(k_ref, x_ref, o_ref, *, chunk):
    """One batch tile of block_rows*128 circuit evaluations.

    k_ref : (9,) f32 SMEM  (scalar prefetch) folded Pauli coefficients, K[3a+b]
    x_ref : (2, block_rows, 128) f32 VMEM   encoding angles (wire, sublane-row, lane)
    o_ref : (block_rows, 128) f32 VMEM      sum_j <Z_j> per batch element
    """
    block_rows = o_ref.shape[0]
    nchunks = block_rows // chunk

    # Hoist SMEM scalar reads out of the chunk loop (read once per grid step).
    k = [k_ref[i] for i in range(9)]

    def body(c, carry):
        off = pl.multiple_of(c * chunk, chunk)
        x0 = x_ref[0, pl.ds(off, chunk), :]
        x1 = x_ref[1, pl.ds(off, chunk), :]
        c0 = jnp.cos(x0)
        s0 = jnp.sin(x0)
        c1 = jnp.cos(x1)
        s1 = jnp.sin(x1)
        # out = sum_{a,b} K[a,b] * m_a(x0) * m_b(x1),  m = [1, cos, sin]
        g_i = k[0] + k[3] * c0 + k[6] * s0   # b = I
        g_c = k[1] + k[4] * c0 + k[7] * s0   # b = X (cos)
        g_s = k[2] + k[5] * c0 + k[8] * s0   # b = Z (sin, sign already folded)
        o_ref[pl.ds(off, chunk), :] = g_i + g_c * c1 + g_s * s1
        return carry

    jax.lax.fori_loop(0, nchunks, body, 0, unroll=nchunks <= 8)


# ----------------------------------------------------------------------------
# Wrapper-side constant fold of the trained layers + readout
# ----------------------------------------------------------------------------
def _pauli_coeffs(w, wires):
    """Return K.reshape(9): sum_j <Z_j> = sum_{a,b} K[a,b]*m_a(x0)*m_b(x1), m=[1,cos,sin].
    For wires==1 only the b==I column is non-zero (x1 is ignored by construction)."""
    f32 = jnp.float32
    w = w.astype(f32)
    I2 = jnp.eye(2, dtype=f32)
    X = jnp.array([[0.0, 1.0], [1.0, 0.0]], f32)
    Z = jnp.array([[1.0, 0.0], [0.0, -1.0]], f32)
    paulis = [I2, X, Z]
    sgn = jnp.array([1.0, 1.0, -1.0], f32)     # encoding moments: <X>=cos, <Z>=-sin

    def ry(theta):
        c, s = jnp.cos(theta * 0.5), jnp.sin(theta * 0.5)
        return jnp.stack([jnp.stack([c, -s]), jnp.stack([s, c])])

    layers = w.shape[0]
    if wires == 2:
        # CNOT(0 -> 1), wire 0 = MSB  (|10> <-> |11>)
        E = jnp.array(
            [[1, 0, 0, 0], [0, 1, 0, 0], [0, 0, 0, 1], [0, 0, 1, 0]], f32)
        M = jnp.eye(4, dtype=f32)
        for kk in range(layers):
            R = jnp.kron(ry(w[kk, 0]), ry(w[kk, 1]))
            M = R @ (E @ M)
        zsum = jnp.array([2.0, 0.0, 0.0, -2.0], f32)        # Z0 + Z1
        O = M.T @ (zsum[:, None] * M)                       # real symmetric 4x4
        K = jnp.stack([
            jnp.stack([jnp.sum(jnp.kron(paulis[a], paulis[b]) * O) * 0.25
                       for b in range(3)])
            for a in range(3)])
        K = K * sgn[:, None] * sgn[None, :]
    else:  # wires == 1 (entangling layer is empty)
        M = jnp.eye(2, dtype=f32)
        for kk in range(layers):
            M = ry(w[kk, 0]) @ M
        O = M.T @ (jnp.array([1.0, -1.0], f32)[:, None] * M)
        col = jnp.stack([jnp.sum(paulis[a] * O) * 0.5 for a in range(3)]) * sgn
        K = jnp.concatenate([col[:, None], jnp.zeros((3, 2), f32)], axis=1)
    return K.reshape(-1)


# ----------------------------------------------------------------------------
# Tiling helpers
# ----------------------------------------------------------------------------
_CHUNK = 32              # sublanes per in-kernel chunk (keeps temps in vregs)
_MAX_BLOCK_ROWS = 2048   # 2048x128 f32 input block = 2 MiB (+1 MiB out) per buffer


def _round_up(v, m):
    return -(-v // m) * m


def _choose_tiling(rows):
    """(block_rows, chunk): big blocks for overhead amortization, >=2 tiles when
    possible (v7x has 2 TensorCores), chunked consumption inside the kernel."""
    if rows <= _CHUNK:
        br = max(8, _round_up(rows, 8))
        return br, br
    half = _round_up(-(-rows // 2), _CHUNK)
    return min(half, _MAX_BLOCK_ROWS), _CHUNK


# ----------------------------------------------------------------------------
# Qfilter.forward
# ----------------------------------------------------------------------------
@functools.partial(jax.jit, static_argnames=("wires", "circuit_layers", "dilation"))
def qfilter_forward(x, q_para, *, wires=2, circuit_layers=1, dilation=1):
    """x: (bs, t) float; q_para: (circuit_layers, wires). Returns (bs, 1, t_out) f32."""
    bs, t = x.shape
    x = x.astype(jnp.float32)
    assert wires in (1, 2), "Qfilter data-encoding path is defined for wires in {1, 2}"

    if wires == 2:
        t_out = t - dilation
        if t_out <= 0 or bs == 0:
            return jnp.zeros((bs, 1, max(t_out, 0)), jnp.float32)
        enc = jnp.stack(
            [x[:, :t_out].reshape(-1), x[:, dilation:dilation + t_out].reshape(-1)],
            axis=0)                                            # (2, N)
    else:
        t_out = t
        if t_out == 0 or bs == 0:
            return jnp.zeros((bs, 1, t_out), jnp.float32)
        xf = x.reshape(-1)
        enc = jnp.stack([xf, xf], axis=0)                      # wire-1 coeffs are zero

    n_batch = enc.shape[1]
    rows = -(-n_batch // 128)
    block_rows, chunk = _choose_tiling(rows)
    rows_padded = _round_up(rows, block_rows)
    num_tiles = rows_padded // block_rows
    n_padded = rows_padded * 128

    enc_tiles = jnp.pad(enc, ((0, 0), (0, n_padded - n_batch))).reshape(
        2, rows_padded, 128)
    coef = _pauli_coeffs(q_para, wires)                        # (9,) f32 -> SMEM

    kernel = functools.partial(_qfilter_kernel, chunk=chunk)
    z_sum = pl.pallas_call(
        kernel,
        out_shape=jax.ShapeDtypeStruct((rows_padded, 128), jnp.float32),
        grid_spec=pltpu.PrefetchScalarGridSpec(
            num_scalar_prefetch=1,                             # coef -> SMEM
            grid=(num_tiles,),
            in_specs=[
                pl.BlockSpec((2, block_rows, 128), lambda i, k_r: (0, i, 0)),
            ],
            out_specs=pl.BlockSpec((block_rows, 128), lambda i, k_r: (i, 0)),
        ),
        compiler_params=pltpu.CompilerParams(dimension_semantics=("parallel",)),
    )(coef, enc_tiles)

    out = z_sum.reshape(-1)[:n_batch].reshape(bs, t_out)       # per-wire sum already fused
    return out.reshape(bs, 1, t_out)


# ----------------------------------------------------------------------------
# Plain-JAX statevector reference (same math as the PennyLane circuit + forward)
# ----------------------------------------------------------------------------
def _reference_circuit(x, w, wires, layers):
    """x: (batch, wires) angles; returns (wires, batch) of <Z_j>."""
    n = wires
    dim = 1 << n
    b = x.shape[0]
    st = jnp.full((b, dim), 1.0 / math.sqrt(dim), jnp.float32)

    def ry(st, q, theta):
        c = jnp.cos(theta / 2)
        s = jnp.sin(theta / 2)
        cols = [st[:, i] for i in range(dim)]
        stride = 1 << (n - 1 - q)
        for i0 in range(dim):
            if (i0 >> (n - 1 - q)) & 1:
                continue
            i1 = i0 + stride
            a0, a1 = cols[i0], cols[i1]
            cols[i0] = c * a0 - s * a1
            cols[i1] = s * a0 + c * a1
        return jnp.stack(cols, axis=1)

    def cnot(st, c, t):
        perm = [i ^ (1 << (n - 1 - t)) if ((i >> (n - 1 - c)) & 1) else i
                for i in range(dim)]
        return st[:, jnp.array(perm)]

    for q in range(n):
        st = ry(st, q, x[:, q])
    for k in range(layers):
        for i in range(0, n - 1, 2):
            st = cnot(st, i, i + 1)
        for i in range(1, n - 1, 2):
            st = cnot(st, i, i + 1)
        for q in range(n):
            st = ry(st, q, w[k, q])
    probs = st * st
    signs = jnp.array(
        [[1.0 if ((i >> (n - 1 - j)) & 1) == 0 else -1.0 for i in range(dim)]
         for j in range(n)], jnp.float32)
    return signs @ probs.T


def _reference_qfilter(x, w, wires, layers, dilation):
    bs, t = x.shape
    t_out = t - dilation
    enc = jnp.stack(
        [x[:, :t_out].reshape(-1), x[:, dilation:dilation + t_out].reshape(-1)], axis=1)
    z = _reference_circuit(enc, w, wires, layers)              # (wires, N)
    out = jnp.sum(z, axis=0).reshape(bs, t_out)
    return out.reshape(bs, 1, t_out)


def _reference_qfilter_w1(x, w, layers):
    bs, t = x.shape
    enc = x.reshape(-1, 1)
    z = _reference_circuit(enc, w, 1, layers)                  # (1, N)
    return z[0].reshape(bs, 1, t)


# ----------------------------------------------------------------------------
if __name__ == "__main__":
    key = jax.random.PRNGKey(0)
    kx, kw, kx2, kx3 = jax.random.split(key, 4)

    # Small module-consistent shapes: bs=2, t=16, wires=2, 1 layer.
    wires, circuit_layers, dilation = 2, 1, 1
    bs, t = 2, 16
    x = jax.random.normal(kx, (bs, t), dtype=jnp.float32)
    q_para = jax.random.normal(kw, (circuit_layers, wires), dtype=jnp.float32)

    out = jax.block_until_ready(
        qfilter_forward(x, q_para, wires=wires, circuit_layers=circuit_layers,
                        dilation=dilation))
    ref = _reference_qfilter(x, q_para, wires, circuit_layers, dilation)
    assert out.shape == (bs, 1, t - dilation)
    assert out.dtype == jnp.float32
    assert jnp.allclose(out, ref, atol=1e-5), (out, ref)

    # Larger batch + multiple layers: exercises padding, the in-kernel chunk loop
    # (block_rows=64 > chunk=32) and 2 grid tiles.
    layers2 = 3
    q2 = jax.random.normal(kw, (layers2, wires), dtype=jnp.float32)
    bs2, t2 = 4, 3000
    x2 = jax.random.normal(kx2, (bs2, t2), dtype=jnp.float32)
    out2 = jax.block_until_ready(
        qfilter_forward(x2, q2, wires=wires, circuit_layers=layers2,
                        dilation=dilation))
    ref2 = _reference_qfilter(x2, q2, wires, layers2, dilation)
    assert out2.shape == (bs2, 1, t2 - dilation)
    assert jnp.allclose(out2, ref2, atol=1e-4), "multi-tile mismatch"

    # wires == 1 path (no entangling layer, t_out == t).
    q1 = jax.random.normal(kw, (2, 1), dtype=jnp.float32)
    x3 = jax.random.normal(kx3, (2, 16), dtype=jnp.float32)
    out3 = jax.block_until_ready(
        qfilter_forward(x3, q1, wires=1, circuit_layers=2, dilation=1))
    ref3 = _reference_qfilter_w1(x3, q1, 2)
    assert out3.shape == (2, 1, 16)
    assert jnp.allclose(out3, ref3, atol=1e-5), "wires==1 mismatch"

    print("KERNEL_OK")
</pallas_src>

<mosaic_0001>
module attributes {stable_mosaic.version = 11 : i64} {
  func.func @_qfilter_kernel(%arg0: i32, %arg1: memref<9xf32, #tpu.memory_space<smem>>, %arg2: memref<2x8x128xf32, #tpu.memory_space<vmem>>, %arg3: memref<8x128xf32, #tpu.memory_space<vmem>>) attributes {dimension_semantics = [#tpu.dimension_semantics<parallel>], iteration_bounds = array<i64: 1>, scalar_prefetch = 1 : i64, scratch_operands = 0 : i64, tpu.core_type = #tpu.core_type<tc>, window_params = [{transform_indices = @transform_0, window_bounds = array<i64: 2, 8, 128>}, {transform_indices = @transform_1, window_bounds = array<i64: 8, 128>}]} {
    %c0 = arith.constant 0 : index
    %0 = memref.load %arg1[%c0] : memref<9xf32, #tpu.memory_space<smem>>
    %c1 = arith.constant 1 : index
    %1 = memref.load %arg1[%c1] : memref<9xf32, #tpu.memory_space<smem>>
    %c2 = arith.constant 2 : index
    %2 = memref.load %arg1[%c2] : memref<9xf32, #tpu.memory_space<smem>>
    %c3 = arith.constant 3 : index
    %3 = memref.load %arg1[%c3] : memref<9xf32, #tpu.memory_space<smem>>
    %c4 = arith.constant 4 : index
    %4 = memref.load %arg1[%c4] : memref<9xf32, #tpu.memory_space<smem>>
    %c5 = arith.constant 5 : index
    %5 = memref.load %arg1[%c5] : memref<9xf32, #tpu.memory_space<smem>>
    %c6 = arith.constant 6 : index
    %6 = memref.load %arg1[%c6] : memref<9xf32, #tpu.memory_space<smem>>
    %c7 = arith.constant 7 : index
    %7 = memref.load %arg1[%c7] : memref<9xf32, #tpu.memory_space<smem>>
    %c8 = arith.constant 8 : index
    %8 = memref.load %arg1[%c8] : memref<9xf32, #tpu.memory_space<smem>>
    %c0_i32 = arith.constant 0 : i32
    %c8_i32 = arith.constant 8 : i32
    %9 = arith.muli %c0_i32, %c8_i32 : i32
    %10 = tpu.assume_multiple %9, 8 : i32
    %c0_0 = arith.constant 0 : index
    %11 = arith.index_cast %10 : i32 to index
    %c0_1 = arith.constant 0 : index
    %12 = vector.load %arg2[%c0_0, %11, %c0_1] : memref<2x8x128xf32, #tpu.memory_space<vmem>>, vector<1x8x128xf32>
    %13 = vector.shape_cast %12 : vector<1x8x128xf32> to vector<8x128xf32>
    %c1_2 = arith.constant 1 : index
    %14 = arith.index_cast %10 : i32 to index
    %c0_3 = arith.constant 0 : index
    %15 = vector.load %arg2[%c1_2, %14, %c0_3] : memref<2x8x128xf32, #tpu.memory_space<vmem>>, vector<1x8x128xf32>
    %16 = vector.shape_cast %15 : vector<1x8x128xf32> to vector<8x128xf32>
    %17 = math.cos %13 : vector<8x128xf32>
    %18 = math.sin %13 : vector<8x128xf32>
    %19 = math.cos %16 : vector<8x128xf32>
    %20 = math.sin %16 : vector<8x128xf32>
    %21 = vector.broadcast %3 : f32 to vector<8x128xf32>
    %22 = arith.mulf %21, %17 : vector<8x128xf32>
    %23 = vector.broadcast %0 : f32 to vector<8x128xf32>
    %24 = arith.addf %23, %22 : vector<8x128xf32>
    %25 = vector.broadcast %6 : f32 to vector<8x128xf32>
    %26 = arith.mulf %25, %18 : vector<8x128xf32>
    %27 = arith.addf %24, %26 : vector<8x128xf32>
    %28 = vector.broadcast %4 : f32 to vector<8x128xf32>
    %29 = arith.mulf %28, %17 : vector<8x128xf32>
    %30 = vector.broadcast %1 : f32 to vector<8x128xf32>
    %31 = arith.addf %30, %29 : vector<8x128xf32>
    %32 = vector.broadcast %7 : f32 to vector<8x128xf32>
    %33 = arith.mulf %32, %18 : vector<8x128xf32>
    %34 = arith.addf %31, %33 : vector<8x128xf32>
    %35 = vector.broadcast %5 : f32 to vector<8x128xf32>
    %36 = arith.mulf %35, %17 : vector<8x128xf32>
    %37 = vector.broadcast %2 : f32 to vector<8x128xf32>
    %38 = arith.addf %37, %36 : vector<8x128xf32>
    %39 = vector.broadcast %8 : f32 to vector<8x128xf32>
    %40 = arith.mulf %39, %18 : vector<8x128xf32>
    %41 = arith.addf %38, %40 : vector<8x128xf32>
    %42 = arith.mulf %34, %19 : vector<8x128xf32>
    %43 = arith.addf %27, %42 : vector<8x128xf32>
    %44 = arith.mulf %41, %20 : vector<8x128xf32>
    %45 = arith.addf %43, %44 : vector<8x128xf32>
    %46 = arith.index_cast %10 : i32 to index
    %c0_4 = arith.constant 0 : index
    %47 = vector.load %arg3[%46, %c0_4] : memref<8x128xf32, #tpu.memory_space<vmem>>, vector<8x128xf32>
    tpu.vector_store %arg3[%46, %c0_4], %45 {strides = array<i32>} : memref<8x128xf32, #tpu.memory_space<vmem>>, vector<8x128xf32>,
    %c1_i32 = arith.constant 1 : i32
    return
  }
  func.func @transform_0(%arg0: i32, %arg1: memref<9xf32, #tpu.memory_space<smem>>) -> (i32, i32, i32) {
    %c0_i32 = arith.constant 0 : i32
    %c0_i32_0 = arith.constant 0 : i32
    %c0_i32_1 = arith.constant 0 : i32
    return %c0_i32, %arg0, %c0_i32_0 : i32, i32, i32
  }
  func.func @transform_1(%arg0: i32, %arg1: memref<9xf32, #tpu.memory_space<smem>>) -> (i32, i32) {
    %c0_i32 = arith.constant 0 : i32
    %c0_i32_0 = arith.constant 0 : i32
    return %arg0, %c0_i32 : i32, i32
  }
}

</mosaic_0001>

<llo_original>
// kernel: qfilter_forward.1
$region0: #{qfilter_forward.1}
  #allocation0 [shape = 'u32[]', space=smem, size = 0x4, offset = 0x4, fixed_abs, tag = 'smem constant byte address 0x4 - core index']
  #allocation1 [shape = 'u32[144,128]{1,0:T(1,128)}', space=vmem, size = 0x12000, scoped, tag = 'internal scratch']
  #allocation2 [shape = 's32[1]{0}', space=sflag, size = 0x4, scoped, tag = 'scoped memory for qfilter_forward.1']
  #allocation3 [shape = 'u8[512]{0}', space=smem, size = 0x200, scoped, tag = 'prefetched SMEM operand 0']
  %s0 = inlined_call_operand.vmem [shape: f32[9], index: 0, kind: input, shape index: {}]
  %s1 = inlined_call_operand.vmem [shape: f32[2,8,128], index: 1, kind: input, shape index: {}]
  %s2 = inlined_call_operand.vmem [shape: f32[8,128], index: 2, kind: output, shape index: {}]
  %s3 = sld [smem:[#allocation0]]
  $region14: #{qfilter_forward.1} parent=0
    _
  %s5 = ssub.s32 1, %s3
  %s6 = scalar_select 0, %s5, %s3
  %s7 = sshll.u32 %s0, 4
  %s8 = int_to_ptr.vmem [resolvable:$true] %s7
  %10 = dma.vmem_to_smem %s8, 16, [#allocation3], [#allocation2]
  %11 = dma.done [#allocation2], 16
  %12 = sfence
  // Predicated region
  $region2: #{qfilter_forward.1} parent=0 // pred_check
    _
  $region3: #{qfilter_forward.1} parent=0 // pred_check_branch
    %14 = sbr.rel (0) target = $region5
  $region4: #{qfilter_forward.1} parent=0 // pred_region
    _
  $region5: #{qfilter_forward.1} parent=0 // pred_fallthru
    _
  %s15 = sld [smem:[#allocation3]]
  %s16 = sld [smem:[#allocation3 + $0x1]]
  %s17 = sld [smem:[#allocation3 + $0x2]]
  %s18 = sld [smem:[#allocation3 + $0x3]]
  %s19 = sld [smem:[#allocation3 + $0x4]]
  %s20 = sld [smem:[#allocation3 + $0x5]]
  %s21 = sld [smem:[#allocation3 + $0x6]]
  %s22 = sld [smem:[#allocation3 + $0x7]]
  %s23 = sld [smem:[#allocation3 + $0x8]]
  %v24 = vld [vmem:[%s1] sm:$0xff]
  %s25 = sadd.s32 0, 8
  %s26 = scalar_lea.vmem %s1, %s25
  %v27 = vld [vmem:[%s26] sm:$0xff]
  %v28 = vand.u32 2147483647, %v24
  %vm29 = vcmp.le.f32.partialorder %v28, 0.7853982
  %vm30 = vcmp.lt.s32.totalorder %v24, 0
  %v31 = vand.u32 %v24, 2139095040
  %v32 = vshrl.u32 %v31, 23
  %v33 = vsub.s32 %v32, 127
  %v34 = vand.u32 2147483647, %v24
  %v35 = vand.u32 %v34, 8388607
  %v36 = vor.u32 %v35, 8388608
  %v37 = vsub.s32 0, %v36
  %v38 = vadd.s32 %v33, 1
  %vm39 = vcmp.gt.s32.totalorder %v38, 0
  %v40 = vsel %vm39, %v38, 0
  %v41 = vshrl.u32 %v40, 5
  %v42 = vand.u32 %v40, 31
  %v43 = vsub.s32 32, %v42
  %v44 = vshrl.u32 683565275, %v43
  %v45 = vshll.u32 683565275, %v42
  %v46 = vshrl.u32 2475754826, %v43
  %v47 = vor.u32 %v45, %v46
  %v48 = vshll.u32 2475754826, %v42
  %v49 = vshrl.u32 2131351028, %v43
  %v50 = vor.u32 %v48, %v49
  %v51 = vshll.u32 2131351028, %v42
  %v52 = vshrl.u32 2102212464, %v43
  %v53 = vor.u32 %v51, %v52
  %v54 = vshll.u32 2102212464, %v42
  %v55 = vshrl.u32 920167782, %v43
  %v56 = vor.u32 %v54, %v55
  %v57 = vshll.u32 920167782, %v42
  %v58 = vshrl.u32 1326507024, %v43
  %v59 = vor.u32 %v57, %v58
  %vm60 = vcmp.lt.s32.totalorder %v41, 1
  %vm61 = vcmp.lt.s32.totalorder %v41, 2
  %vm62 = vcmp.lt.s32.totalorder %v41, 3
  %vm63 = vcmp.lt.s32.totalorder %v41, 4
  %v64 = vsel %vm60, %v44, %v47
  %v65 = vsel %vm63, %v53, 2102212464
  %v66 = vsel %vm62, %v50, %v65
  %v67 = vsel %vm61, %v64, %v66
  %v68 = vsel %vm60, %v47, %v50
  %v69 = vsel %vm63, %v56, 920167782
  %v70 = vsel %vm62, %v53, %v69
  %v71 = vsel %vm61, %v68, %v70
  %v72 = vsel %vm60, %v50, %v53
  %v73 = vsel %vm63, %v59, 1326507024
  %v74 = vsel %vm62, %v56, %v73
  %v75 = vsel %vm61, %v72, %v74
  %v76 = vshll.u32 %v36, 8
  %v77 = vmul.u32.u64.compose %v76, %v75
  %v78 = vextract.low.u32 %v77
  %v79 = vextract.high.u32 %v77
  %v80 = vmul.u32.u64.compose %v76, %v71
  %v81 = vextract.low.u32 %v80
  %v82 = vextract.high.u32 %v80
  %v83 = vmul.u32 %v76, %v67
  %v84 = vadd.s32 %v79, %v81
  %vm85 = vc.u32 %v79, %v81
  %v86 = vadd.s32 %v82, 1
  %v87 = vsel %vm85, %v86, %v82
  %v88 = vadd.s32 %v83, %v87
  %v89 = vadd.s32 %v88, 536870912
  %v90 = vshrl.u32 %v89, 30
  %v91 = vshll.u32 %v90, 30
  %v92 = vsub.s32 %v88, %v91
  %vm93 = vcmp.lt.s32.totalorder %v92, 0
  %v94 = vsub.s32 0, %v92
  %v95 = vsel %vm93, %v94, %v92
  %v96 = vclz %v95
  %v97 = vsub.s32 %v96, 2
  %vm98 = vcmp.gt.s32.totalorder 0, %v97
  %v99 = vsel %vm98, 0, %v97
  %v100 = vsub.s32 32, %v99
  %v101 = vshll.u32 %v92, %v99
  %v102 = vshrl.u32 %v84, %v100
  %v103 = vor.u32 %v101, %v102
  %v104 = vsub.s32 4294967266, %v99
  %v105 = vadd.s32 %v104, 127
  %v106 = vshll.u32 %v105, 23
  %v107 = vor.u32 4788187, %v106
  %v108 = vand.u32 2147483647, %v107
  %v110 = vcvt.s32.f32 %v103
  %v111 = vmul.f32 %v110, %v108
  %v112 = vxor.u32 %v111, 2147483648
  %v113 = vsel %vm30, %v112, %v111
  %v114 = vsub.s32 4, %v90
  %v115 = vsel %vm30, %v114, %v90
  %v116 = vsel %vm29, %v24, %v113
  %v117 = vsel %vm29, 0, %v115
  %v118 = vcosq.f32.pop %v116
  %v119 = vsinq.f32.pop %v116
  %vm120 = vweird.f32 %v24
  %v121 = vand.u32 %v117, 3
  %vm122 = vcmp.lt.s32.totalorder %v121, 2
  %vm123 = vcmp.eq.s32.totalorder %v121, 0
  %v124 = vxor.u32 %v119, 2147483648
  %v125 = vsel %vm123, %v118, %v124
  %vm126 = vcmp.eq.s32.totalorder %v121, 2
  %v127 = vxor.u32 %v118, 2147483648
  %v128 = vsel %vm126, %v127, %v119
  %v129 = vsel %vm122, %v125, %v128
  %v130 = vsel %vm120, nan, %v129
  %v131 = vand.u32 2147483647, %v24
  %vm132 = vcmp.le.f32.partialorder %v131, 0.7853982
  %vm133 = vcmp.lt.s32.totalorder %v24, 0
  %v134 = vand.u32 %v24, 2139095040
  %v135 = vshrl.u32 %v134, 23
  %v136 = vsub.s32 %v135, 127
  %v137 = vand.u32 2147483647, %v24
  %v138 = vand.u32 %v137, 8388607
  %v139 = vor.u32 %v138, 8388608
  %v140 = vsub.s32 0, %v139
  %v141 = vadd.s32 %v136, 1
  %vm142 = vcmp.gt.s32.totalorder %v141, 0
  %v143 = vsel %vm142, %v141, 0
  %v144 = vshrl.u32 %v143, 5
  %v145 = vand.u32 %v143, 31
  %v146 = vsub.s32 32, %v145
  %v147 = vshrl.u32 683565275, %v146
  %v148 = vshll.u32 683565275, %v145
  %v149 = vshrl.u32 2475754826, %v146
  %v150 = vor.u32 %v148, %v149
  %v151 = vshll.u32 2475754826, %v145
  %v152 = vshrl.u32 2131351028, %v146
  %v153 = vor.u32 %v151, %v152
  %v154 = vshll.u32 2131351028, %v145
  %v155 = vshrl.u32 2102212464, %v146
  %v156 = vor.u32 %v154, %v155
  %v157 = vshll.u32 2102212464, %v145
  %v158 = vshrl.u32 920167782, %v146
  %v159 = vor.u32 %v157, %v158
  %v160 = vshll.u32 920167782, %v145
  %v161 = vshrl.u32 1326507024, %v146
  %v162 = vor.u32 %v160, %v161
  %vm163 = vcmp.lt.s32.totalorder %v144, 1
  %vm164 = vcmp.lt.s32.totalorder %v144, 2
  %vm165 = vcmp.lt.s32.totalorder %v144, 3
  %vm166 = vcmp.lt.s32.totalorder %v144, 4
  %v167 = vsel %vm163, %v147, %v150
  %v168 = vsel %vm166, %v156, 2102212464
  %v169 = vsel %vm165, %v153, %v168
  %v170 = vsel %vm164, %v167, %v169
  %v171 = vsel %vm163, %v150, %v153
  %v172 = vsel %vm166, %v159, 920167782
  %v173 = vsel %vm165, %v156, %v172
  %v174 = vsel %vm164, %v171, %v173
  %v175 = vsel %vm163, %v153, %v156
  %v176 = vsel %vm166, %v162, 1326507024
  %v177 = vsel %vm165, %v159, %v176
  %v178 = vsel %vm164, %v175, %v177
  %v179 = vshll.u32 %v139, 8
  %v180 = vmul.u32.u64.compose %v179, %v178
  %v181 = vextract.low.u32 %v180
  %v182 = vextract.high.u32 %v180
  %v183 = vmul.u32.u64.compose %v179, %v174
  %v184 = vextract.low.u32 %v183
  %v185 = vextract.high.u32 %v183
  %v186 = vmul.u32 %v179, %v170
  %v187 = vadd.s32 %v182, %v184
  %vm188 = vc.u32 %v182, %v184
  %v189 = vadd.s32 %v185, 1
  %v190 = vsel %vm188, %v189, %v185
  %v191 = vadd.s32 %v186, %v190
  %v192 = vadd.s32 %v191, 536870912
  %v193 = vshrl.u32 %v192, 30
  %v194 = vshll.u32 %v193, 30
  %v195 = vsub.s32 %v191, %v194
  %vm196 = vcmp.lt.s32.totalorder %v195, 0
  %v197 = vsub.s32 0, %v195
  %v198 = vsel %vm196, %v197, %v195
  %v199 = vclz %v198
  %v200 = vsub.s32 %v199, 2
  %vm201 = vcmp.gt.s32.totalorder 0, %v200
  %v202 = vsel %vm201, 0, %v200
  %v203 = vsub.s32 32, %v202
  %v204 = vshll.u32 %v195, %v202
  %v205 = vshrl.u32 %v187, %v203
  %v206 = vor.u32 %v204, %v205
  %v207 = vsub.s32 4294967266, %v202
  %v208 = vadd.s32 %v207, 127
  %v209 = vshll.u32 %v208, 23
  %v210 = vor.u32 4788187, %v209
  %v211 = vand.u32 2147483647, %v210
  %v213 = vcvt.s32.f32 %v206
  %v214 = vmul.f32 %v213, %v211
  %v215 = vxor.u32 %v214, 2147483648
  %v216 = vsel %vm133, %v215, %v214
  %v217 = vsub.s32 4, %v193
  %v218 = vsel %vm133, %v217, %v193
  %v219 = vsel %vm132, %v24, %v216
  %v220 = vsel %vm132, 0, %v218
  %v221 = vcosq.f32.pop %v219
  %v222 = vsinq.f32.pop %v219
  %vm223 = vweird.f32 %v24
  %v224 = vadd.s32 %v220, 3
  %v225 = vand.u32 %v224, 3
  %vm226 = vcmp.lt.s32.totalorder %v225, 2
  %vm227 = vcmp.eq.s32.totalorder %v225, 0
  %v228 = vxor.u32 %v222, 2147483648
  %v229 = vsel %vm227, %v221, %v228
  %vm230 = vcmp.eq.s32.totalorder %v225, 2
  %v231 = vxor.u32 %v221, 2147483648
  %v232 = vsel %vm230, %v231, %v222
  %v233 = vsel %vm226, %v229, %v232
  %v234 = vsel %vm223, nan, %v233
  %v235 = vand.u32 2147483647, %v27
  %vm236 = vcmp.le.f32.partialorder %v235, 0.7853982
  %vm237 = vcmp.lt.s32.totalorder %v27, 0
  %v238 = vand.u32 %v27, 2139095040
  %v239 = vshrl.u32 %v238, 23
  %v240 = vsub.s32 %v239, 127
  %v241 = vand.u32 2147483647, %v27
  %v242 = vand.u32 %v241, 8388607
  %v243 = vor.u32 %v242, 8388608
  %v244 = vsub.s32 0, %v243
  %v245 = vadd.s32 %v240, 1
  %vm246 = vcmp.gt.s32.totalorder %v245, 0
  %v247 = vsel %vm246, %v245, 0
  %v248 = vshrl.u32 %v247, 5
  %v249 = vand.u32 %v247, 31
  %v250 = vsub.s32 32, %v249
  %v251 = vshrl.u32 683565275, %v250
  %v252 = vshll.u32 683565275, %v249
  %v253 = vshrl.u32 2475754826, %v250
  %v254 = vor.u32 %v252, %v253
  %v255 = vshll.u32 2475754826, %v249
  %v256 = vshrl.u32 2131351028, %v250
  %v257 = vor.u32 %v255, %v256
  %v258 = vshll.u32 2131351028, %v249
  %v259 = vshrl.u32 2102212464, %v250
  %v260 = vor.u32 %v258, %v259
  %v261 = vshll.u32 2102212464, %v249
  %v262 = vshrl.u32 920167782, %v250
  %v263 = vor.u32 %v261, %v262
  %v264 = vshll.u32 920167782, %v249
  %v265 = vshrl.u32 1326507024, %v250
  %v266 = vor.u32 %v264, %v265
  %vm267 = vcmp.lt.s32.totalorder %v248, 1
  %vm268 = vcmp.lt.s32.totalorder %v248, 2
  %vm269 = vcmp.lt.s32.totalorder %v248, 3
  %vm270 = vcmp.lt.s32.totalorder %v248, 4
  %v271 = vsel %vm267, %v251, %v254
  %v272 = vsel %vm270, %v260, 2102212464
  %v273 = vsel %vm269, %v257, %v272
  %v274 = vsel %vm268, %v271, %v273
  %v275 = vsel %vm267, %v254, %v257
  %v276 = vsel %vm270, %v263, 920167782
  %v277 = vsel %vm269, %v260, %v276
  %v278 = vsel %vm268, %v275, %v277
  %v279 = vsel %vm267, %v257, %v260
  %v280 = vsel %vm270, %v266, 1326507024
  %v281 = vsel %vm269, %v263, %v280
  %v282 = vsel %vm268, %v279, %v281
  %v283 = vshll.u32 %v243, 8
  %v284 = vmul.u32.u64.compose %v283, %v282
  %v285 = vextract.low.u32 %v284
  %v286 = vextract.high.u32 %v284
  %v287 = vmul.u32.u64.compose %v283, %v278
  %v288 = vextract.low.u32 %v287
  %v289 = vextract.high.u32 %v287
  %v290 = vmul.u32 %v283, %v274
  %v291 = vadd.s32 %v286, %v288
  %vm292 = vc.u32 %v286, %v288
  %v293 = vadd.s32 %v289, 1
  %v294 = vsel %vm292, %v293, %v289
  %v295 = vadd.s32 %v290, %v294
  %v296 = vadd.s32 %v295, 536870912
  %v297 = vshrl.u32 %v296, 30
  %v298 = vshll.u32 %v297, 30
  %v299 = vsub.s32 %v295, %v298
  %vm300 = vcmp.lt.s32.totalorder %v299, 0
  %v301 = vsub.s32 0, %v299
  %v302 = vsel %vm300, %v301, %v299
  %v303 = vclz %v302
  %v304 = vsub.s32 %v303, 2
  %vm305 = vcmp.gt.s32.totalorder 0, %v304
  %v306 = vsel %vm305, 0, %v304
  %v307 = vsub.s32 32, %v306
  %v308 = vshll.u32 %v299, %v306
  %v309 = vshrl.u32 %v291, %v307
  %v310 = vor.u32 %v308, %v309
  %v311 = vsub.s32 4294967266, %v306
  %v312 = vadd.s32 %v311, 127
  %v313 = vshll.u32 %v312, 23
  %v314 = vor.u32 4788187, %v313
  %v315 = vand.u32 2147483647, %v314
  %v317 = vcvt.s32.f32 %v310
  %v318 = vmul.f32 %v317, %v315
  %v319 = vxor.u32 %v318, 2147483648
  %v320 = vsel %vm237, %v319, %v318
  %v321 = vsub.s32 4, %v297
  %v322 = vsel %vm237, %v321, %v297
  %v323 = vsel %vm236, %v27, %v320
  %v324 = vsel %vm236, 0, %v322
  %v325 = vcosq.f32.pop %v323
  %v326 = vsinq.f32.pop %v323
  %vm327 = vweird.f32 %v27
  %v328 = vand.u32 %v324, 3
  %vm329 = vcmp.lt.s32.totalorder %v328, 2
  %vm330 = vcmp.eq.s32.totalorder %v328, 0
  %v331 = vxor.u32 %v326, 2147483648
  %v332 = vsel %vm330, %v325, %v331
  %vm333 = vcmp.eq.s32.totalorder %v328, 2
  %v334 = vxor.u32 %v325, 2147483648
  %v335 = vsel %vm333, %v334, %v326
  %v336 = vsel %vm329, %v332, %v335
  %v337 = vsel %vm327, nan, %v336
  %v338 = vand.u32 2147483647, %v27
  %vm339 = vcmp.le.f32.partialorder %v338, 0.7853982
  %vm340 = vcmp.lt.s32.totalorder %v27, 0
  %v341 = vand.u32 %v27, 2139095040
  %v342 = vshrl.u32 %v341, 23
  %v343 = vsub.s32 %v342, 127
  %v344 = vand.u32 2147483647, %v27
  %v345 = vand.u32 %v344, 8388607
  %v346 = vor.u32 %v345, 8388608
  %v347 = vsub.s32 0, %v346
  %v348 = vadd.s32 %v343, 1
  %vm349 = vcmp.gt.s32.totalorder %v348, 0
  %v350 = vsel %vm349, %v348, 0
  %v351 = vshrl.u32 %v350, 5
  %v352 = vand.u32 %v350, 31
  %v353 = vsub.s32 32, %v352
  %v354 = vshrl.u32 683565275, %v353
  %v355 = vshll.u32 683565275, %v352
  %v356 = vshrl.u32 2475754826, %v353
  %v357 = vor.u32 %v355, %v356
  %v358 = vshll.u32 2475754826, %v352
  %v359 = vshrl.u32 2131351028, %v353
  %v360 = vor.u32 %v358, %v359
  %v361 = vshll.u32 2131351028, %v352
  %v362 = vshrl.u32 2102212464, %v353
  %v363 = vor.u32 %v361, %v362
  %v364 = vshll.u32 2102212464, %v352
  %v365 = vshrl.u32 920167782, %v353
  %v366 = vor.u32 %v364, %v365
  %v367 = vshll.u32 920167782, %v352
  %v368 = vshrl.u32 1326507024, %v353
  %v369 = vor.u32 %v367, %v368
  %vm370 = vcmp.lt.s32.totalorder %v351, 1
  %vm371 = vcmp.lt.s32.totalorder %v351, 2
  %vm372 = vcmp.lt.s32.totalorder %v351, 3
  %vm373 = vcmp.lt.s32.totalorder %v351, 4
  %v374 = vsel %vm370, %v354, %v357
  %v375 = vsel %vm373, %v363, 2102212464
  %v376 = vsel %vm372, %v360, %v375
  %v377 = vsel %vm371, %v374, %v376
  %v378 = vsel %vm370, %v357, %v360
  %v379 = vsel %vm373, %v366, 920167782
  %v380 = vsel %vm372, %v363, %v379
  %v381 = vsel %vm371, %v378, %v380
  %v382 = vsel %vm370, %v360, %v363
  %v383 = vsel %vm373, %v369, 1326507024
  %v384 = vsel %vm372, %v366, %v383
  %v385 = vsel %vm371, %v382, %v384
  %v386 = vshll.u32 %v346, 8
  %v387 = vmul.u32.u64.compose %v386, %v385
  %v388 = vextract.low.u32 %v387
  %v389 = vextract.high.u32 %v387
  %v390 = vmul.u32.u64.compose %v386, %v381
  %v391 = vextract.low.u32 %v390
  %v392 = vextract.high.u32 %v390
  %v393 = vmul.u32 %v386, %v377
  %v394 = vadd.s32 %v389, %v391
  %vm395 = vc.u32 %v389, %v391
  %v396 = vadd.s32 %v392, 1
  %v397 = vsel %vm395, %v396, %v392
  %v398 = vadd.s32 %v393, %v397
  %v399 = vadd.s32 %v398, 536870912
  %v400 = vshrl.u32 %v399, 30
  %v401 = vshll.u32 %v400, 30
  %v402 = vsub.s32 %v398, %v401
  %vm403 = vcmp.lt.s32.totalorder %v402, 0
  %v404 = vsub.s32 0, %v402
  %v405 = vsel %vm403, %v404, %v402
  %v406 = vclz %v405
  %v407 = vsub.s32 %v406, 2
  %vm408 = vcmp.gt.s32.totalorder 0, %v407
  %v409 = vsel %vm408, 0, %v407
  %v410 = vsub.s32 32, %v409
  %v411 = vshll.u32 %v402, %v409
  %v412 = vshrl.u32 %v394, %v410
  %v413 = vor.u32 %v411, %v412
  %v414 = vsub.s32 4294967266, %v409
  %v415 = vadd.s32 %v414, 127
  %v416 = vshll.u32 %v415, 23
  %v417 = vor.u32 4788187, %v416
  %v418 = vand.u32 2147483647, %v417
  %v420 = vcvt.s32.f32 %v413
  %v421 = vmul.f32 %v420, %v418
  %v422 = vxor.u32 %v421, 2147483648
  %v423 = vsel %vm340, %v422, %v421
  %v424 = vsub.s32 4, %v400
  %v425 = vsel %vm340, %v424, %v400
  %v426 = vsel %vm339, %v27, %v423
  %v427 = vsel %vm339, 0, %v425
  %v428 = vcosq.f32.pop %v426
  %v429 = vsinq.f32.pop %v426
  %vm430 = vweird.f32 %v27
  %v431 = vadd.s32 %v427, 3
  %v432 = vand.u32 %v431, 3
  %vm433 = vcmp.lt.s32.totalorder %v432, 2
  %vm434 = vcmp.eq.s32.totalorder %v432, 0
  %v435 = vxor.u32 %v429, 2147483648
  %v436 = vsel %vm434, %v428, %v435
  %vm437 = vcmp.eq.s32.totalorder %v432, 2
  %v438 = vxor.u32 %v428, 2147483648
  %v439 = vsel %vm437, %v438, %v429
  %v440 = vsel %vm433, %v436, %v439
  %v441 = vsel %vm430, nan, %v440
  %v442 = vstv %s18
  %v443 = vmul.f32 %v442, %v130
  %v444 = vstv %s15
  %v445 = vadd.f32 %v444, %v443
  %v446 = vstv %s21
  %v447 = vmul.f32 %v446, %v234
  %v448 = vadd.f32 %v445, %v447
  %v449 = vstv %s19
  %v450 = vmul.f32 %v449, %v130
  %v451 = vstv %s16
  %v452 = vadd.f32 %v451, %v450
  %v453 = vstv %s22
  %v454 = vmul.f32 %v453, %v234
  %v455 = vadd.f32 %v452, %v454
  %v456 = vstv %s20
  %v457 = vmul.f32 %v456, %v130
  %v458 = vstv %s17
  %v459 = vadd.f32 %v458, %v457
  %v460 = vstv %s23
  %v461 = vmul.f32 %v460, %v234
  %v462 = vadd.f32 %v459, %v461
  %v463 = vmul.f32 %v455, %v337
  %v464 = vadd.f32 %v448, %v463
  %v465 = vmul.f32 %v462, %v441
  %v466 = vadd.f32 %v464, %v465
  %467 = vst [vmem:[%s2] sm:$0xff] %v466
  // Predicated region
  $region6: #{qfilter_forward.1} parent=0 // pred_check
    _
  $region7: #{qfilter_forward.1} parent=0 // pred_check_branch
    %469 = sbr.rel (0) target = $region9
  $region8: #{qfilter_forward.1} parent=0 // pred_region
    _
  $region9: #{qfilter_forward.1} parent=0 // pred_fallthru
    _
  // Predicated region
  $region10: #{qfilter_forward.1} parent=0 // pred_check
    _
  $region11: #{qfilter_forward.1} parent=0 // pred_check_branch
    %471 = sbr.rel (0) target = $region13
  $region12: #{qfilter_forward.1} parent=0 // pred_region
    _
  $region13: #{qfilter_forward.1} parent=0 // pred_fallthru
    _

</llo_original>
